<compile_context>
chip_gen: v5e
topology: v5e:2x2
jax: 0.10.0
libtpu: 0.0.40
codegen_flags: <defaults>
</compile_context>

<pallas_src>
import jax
import jax.numpy as jnp
from jax.experimental import pallas as pl
from jax.experimental.pallas import tpu as pltpu


# Conservative per-call VMEM budget: leaves double-buffer headroom under the
# v7x 64 MiB per-TC VMEM and is far below v5e/v6e's 128 MiB.
_VMEM_BUDGET = 44 * 1024 * 1024


def _round_up(x, m):
    return (x + m - 1) // m * m


def _pick_m_tile(M, tm_cap):
    """Pick the M (patch-rows) tile.

    Preference order:
      1. the largest multiple-of-8 divisor of M that is <= min(tm_cap, M // 2)
         (no pad/slice copies AND >= 2 grid steps so v7x megacore engages);
      2. M itself if it fits tm_cap (single full-extent block, no copies);
      3. pad M up to a multiple-of-8 tile (costs one pad + one slice copy).
    Returns (TM, M_pad).
    """
    limit = min(tm_cap, M // 2)
    if limit >= 8:
        for cand in range(limit - limit % 8, 7, -8):
            if M % cand == 0:
                return cand, M
    if M <= tm_cap:
        return M, M            # full-extent block is legal even if M % 8 != 0
    cap8 = max(8, tm_cap - tm_cap % 8)
    TM = min(cap8, _round_up(M, 8))
    return TM, _round_up(M, TM)


def _patch_embed_kernel_1k(x_ref, w_ref, b_ref, o_ref):
    # Fast path: single K tile.  One MXU matmul with f32 accumulation inside
    # the dot, bias add, store.  No VMEM accumulator scratch (saves 3-4 extra
    # VMEM sweeps of a (TM, E) f32 buffer per tile).
    acc = jnp.dot(x_ref[...], w_ref[...], preferred_element_type=jnp.float32)
    o_ref[...] = (acc + b_ref[...].astype(jnp.float32)).astype(o_ref.dtype)


def _patch_embed_kernel_ksplit(x_ref, w_ref, b_ref, o_ref, acc_ref):
    # Fallback for K too large to keep a single (K, E) weight tile resident.
    k = pl.program_id(1)

    @pl.when(k == 0)
    def _():
        acc_ref[...] = jnp.zeros_like(acc_ref)

    acc_ref[...] += jnp.dot(x_ref[...], w_ref[...],
                            preferred_element_type=jnp.float32)

    @pl.when(k == pl.num_programs(1) - 1)
    def _():
        o_ref[...] = (acc_ref[...] + b_ref[...].astype(jnp.float32)
                      ).astype(o_ref.dtype)


def patch_embed_forward(x, weight, bias, patch_size, *, tm=2048, tk=2048,
                        compute_dtype=jnp.bfloat16, out_dtype=None):
    """PatchEmbed forward pass.

    x: (B, C, H, W); weight: (E, C, P, P) [nn.Conv2d layout]; bias: (E,).
    Returns (B, (H // P) * (W // P), E), matching PatchEmbed.forward.

    tm / tk       : upper bounds on the M / K tile.  The default 2048 fits all
                    TPU generations (including v7x's 64 MiB VMEM); the actual
                    tile is derived from the shapes and the VMEM budget, so no
                    pad / slice copies are emitted in the common case.
    compute_dtype : MXU operand dtype.  bf16 (default) halves HBM traffic and
                    accumulates in f32 on the MXU; pass jnp.float32 for
                    bit-closer parity with PyTorch's f32 Conv2d.
    out_dtype     : output dtype (default x.dtype).  Pass jnp.bfloat16 to halve
                    the output HBM stream on memory-bound parts.
    """
    B, C, H, W = x.shape
    P = int(patch_size)
    E = weight.shape[0]
    nH, nW = H // P, W // P
    num_patches = nH * nW
    if H != nH * P or W != nW * P:
        # nn.Conv2d with stride == kernel == P ignores trailing rows/cols that
        # do not fill a full patch; replicate by cropping.
        x = x[:, :, :nH * P, :nW * P]

    M = B * num_patches
    K = C * P * P
    out_dtype = x.dtype if out_dtype is None else out_dtype

    # --- im2col in plain JAX.  Cast first so the relayout writes bf16 bytes;
    # allow_input_fusion (below) lets XLA fuse this producer into the
    # pallas_call instead of materializing an (M, K) matrix in HBM.
    xb = x.astype(compute_dtype)
    patches = xb.reshape(B, C, nH, P, nW, P)
    patches = patches.transpose(0, 2, 4, 1, 3, 5)          # (B, nH, nW, C, P, P)
    patches = patches.reshape(M, K)                        # (M, K)

    # Conv2d weight (E, C, P, P) -> (K, E) so patches @ w_flat == conv output.
    w_flat = weight.reshape(E, K).T.astype(compute_dtype)  # (K, E)
    b_flat = bias.astype(jnp.float32).reshape(1, E)

    in_item = jnp.dtype(compute_dtype).itemsize
    out_item = jnp.dtype(out_dtype).itemsize

    def _single_k_bytes(tm_):
        # double-buffered patch tile + resident weight (counted x2 for safety)
        # + double-buffered out tile + bias row.
        return (2 * tm_ * K * in_item + 2 * K * E * in_item
                + 2 * tm_ * E * out_item + 2 * _round_up(E, 128) * 4)

    # --- choose the M tile (no-copy divisor when possible), then shrink it
    # until the single-K-tile layout fits the VMEM budget.
    TM, M_pad = _pick_m_tile(M, tm)
    while _single_k_bytes(TM) > _VMEM_BUDGET and TM > 256:
        TM, M_pad = _pick_m_tile(M, max(256, TM // 2))
    single_k = _single_k_bytes(TM) <= _VMEM_BUDGET

    if single_k:
        TK, K_pad = K, K
        vmem_need = _single_k_bytes(TM)
    else:
        # Rare path (huge C * P * P): split K, keep the K tile as large as
        # VMEM allows so weight re-fetch traffic per M tile stays small.
        def _ksplit_bytes(tk_):
            return (2 * TM * tk_ * in_item + 2 * tk_ * E * in_item
                    + 2 * TM * E * out_item + TM * E * 4
                    + 2 * _round_up(E, 128) * 4)

        TK = min(_round_up(max(128, min(tk, K)), 128), _round_up(K, 128))
        while _ksplit_bytes(TK) > _VMEM_BUDGET and TK > 512:
            TK = max(512, _round_up(TK // 2, 128))
        K_pad = _round_up(K, TK)
        vmem_need = _ksplit_bytes(TK)

    # --- padding copies only when unavoidable (exact-divisor tiles otherwise).
    if M_pad > M:
        patches = jnp.pad(patches, ((0, M_pad - M), (0, 0)))
    if K_pad > K:
        patches = jnp.pad(patches, ((0, 0), (0, K_pad - K)))
        w_flat = jnp.pad(w_flat, ((0, K_pad - K), (0, 0)))

    vmem_limit = int(min(56 * 1024 * 1024,
                         max(32 * 1024 * 1024,
                             vmem_need + (vmem_need >> 2) + (2 << 20))))

    cost = pl.CostEstimate(
        flops=2 * M_pad * K_pad * E,
        transcendentals=0,
        bytes_accessed=(M_pad * K_pad * in_item + K_pad * E * in_item
                        + E * 4 + M_pad * E * out_item),
    )

    if single_k:
        out = pl.pallas_call(
            _patch_embed_kernel_1k,
            out_shape=jax.ShapeDtypeStruct((M_pad, E), out_dtype),
            grid_spec=pltpu.PrefetchScalarGridSpec(
                num_scalar_prefetch=0,
                grid=(M_pad // TM,),
                in_specs=[
                    # Patch tile streams over M.
                    pl.BlockSpec((TM, K), lambda i: (i, 0)),
                    # Weight + bias: constant index -> VMEM-resident across M.
                    pl.BlockSpec((K, E), lambda i: (0, 0)),
                    pl.BlockSpec((1, E), lambda i: (0, 0)),
                ],
                out_specs=pl.BlockSpec((TM, E), lambda i: (i, 0)),
            ),
            compiler_params=pltpu.CompilerParams(
                dimension_semantics=("parallel",),
                vmem_limit_bytes=vmem_limit,
                # Let XLA fuse the im2col (cast+transpose) producer into the
                # pallas_call's patch operand instead of writing it to HBM.
                allow_input_fusion=[True, False, False],
            ),
            cost_estimate=cost,
        )(patches, w_flat, b_flat)
    else:
        out = pl.pallas_call(
            _patch_embed_kernel_ksplit,
            out_shape=jax.ShapeDtypeStruct((M_pad, E), out_dtype),
            grid_spec=pltpu.PrefetchScalarGridSpec(
                num_scalar_prefetch=0,
                grid=(M_pad // TM, K_pad // TK),
                in_specs=[
                    pl.BlockSpec((TM, TK), lambda i, k: (i, k)),
                    # NOTE: k is innermost, so each weight K-tile is re-DMA'd
                    # per M tile; TK is maximized above to bound that traffic.
                    pl.BlockSpec((TK, E), lambda i, k: (k, 0)),
                    pl.BlockSpec((1, E), lambda i, k: (0, 0)),
                ],
                out_specs=pl.BlockSpec((TM, E), lambda i, k: (i, 0)),
                scratch_shapes=[pltpu.VMEM((TM, E), jnp.float32)],
            ),
            compiler_params=pltpu.CompilerParams(
                dimension_semantics=("parallel", "arbitrary"),
                vmem_limit_bytes=vmem_limit,
                allow_input_fusion=[True, False, False],
            ),
            cost_estimate=cost,
        )(patches, w_flat, b_flat)

    if M_pad > M:
        out = out[:M]
    return out.reshape(B, num_patches, E)


if __name__ == "__main__":
    key = jax.random.PRNGKey(0)
    kx, kw, kb = jax.random.split(key, 3)

    def conv_ref(x, weight, bias, P):
        E = weight.shape[0]
        r = jax.lax.conv_general_dilated(
            x, weight, window_strides=(P, P), padding="VALID",
            dimension_numbers=("NCHW", "OIHW", "NCHW"),
        ) + bias.reshape(1, E, 1, 1)
        return r.reshape(x.shape[0], E, -1).transpose(0, 2, 1)

    # Case 1: small shapes consistent with the module: img=16, patch=8,
    # in_chans=4, embed_dim=32, batch=2 -> num_patches = 4.
    B, C, IMG, P, E = 2, 4, 16, 8, 32
    x = jax.random.normal(kx, (B, C, IMG, IMG), dtype=jnp.float32)
    weight = jax.random.normal(kw, (E, C, P, P), dtype=jnp.float32) * 0.02
    bias = jax.random.normal(kb, (E,), dtype=jnp.float32) * 0.02

    y = patch_embed_forward(x, weight, bias, P)
    jax.block_until_ready(y)
    assert y.shape == (B, (IMG // P) * (IMG // P), E), y.shape
    ref = conv_ref(x, weight, bias, P)
    # Tolerance reflects the bf16 compute dtype used on the MXU path.
    assert jnp.allclose(y, ref, atol=2e-2, rtol=2e-2), \
        float(jnp.max(jnp.abs(y - ref)))

    # Case 2: non-divisible spatial size (Conv2d-style cropping) and a
    # multi-step M grid (M=16, TM=8 -> 2 "parallel" grid steps).
    B2, C2, IMG2, P2, E2 = 1, 3, 17, 4, 32
    x2 = jax.random.normal(kx, (B2, C2, IMG2, IMG2), dtype=jnp.float32)
    w2 = jax.random.normal(kw, (E2, C2, P2, P2), dtype=jnp.float32) * 0.02
    b2 = jax.random.normal(kb, (E2,), dtype=jnp.float32) * 0.02
    y2 = patch_embed_forward(x2, w2, b2, P2)
    jax.block_until_ready(y2)
    ref2 = conv_ref(x2, w2, b2, P2)
    assert y2.shape == ref2.shape, (y2.shape, ref2.shape)
    assert jnp.allclose(y2, ref2, atol=2e-2, rtol=2e-2), \
        float(jnp.max(jnp.abs(y2 - ref2)))

    print("KERNEL_OK")
</pallas_src>

<mosaic_0001>
module attributes {stable_mosaic.version = 11 : i64} {
  func.func @_patch_embed_kernel_1k(%arg0: i32, %arg1: memref<8x256xbf16, #tpu.memory_space<vmem>>, %arg2: memref<256x32xbf16, #tpu.memory_space<vmem>>, %arg3: memref<1x32xf32, #tpu.memory_space<vmem>>, %arg4: memref<8x32xf32, #tpu.memory_space<vmem>>) attributes {dimension_semantics = [#tpu.dimension_semantics<parallel>], iteration_bounds = array<i64: 1>, scalar_prefetch = 0 : i64, scratch_operands = 0 : i64, tpu.core_type = #tpu.core_type<tc>, window_params = [{transform_indices = @transform_0, window_bounds = array<i64: 8, 256>}, {pipeline_mode = #tpu.pipeline_mode<synchronous>, transform_indices = @transform_1, window_bounds = array<i64: 256, 32>}, {pipeline_mode = #tpu.pipeline_mode<synchronous>, transform_indices = @transform_2, window_bounds = array<i64: 1, 32>}, {transform_indices = @transform_3, window_bounds = array<i64: 8, 32>}]} {
    %c0 = arith.constant 0 : index
    %c0_0 = arith.constant 0 : index
    %0 = vector.load %arg1[%c0, %c0_0] : memref<8x256xbf16, #tpu.memory_space<vmem>>, vector<8x256xbf16>
    %c0_1 = arith.constant 0 : index
    %c0_2 = arith.constant 0 : index
    %1 = vector.load %arg2[%c0_1, %c0_2] : memref<256x32xbf16, #tpu.memory_space<vmem>>, vector<256x32xbf16>
    %cst = arith.constant dense<0.000000e+00> : vector<8x32xf32>
    %2 = tpu.matmul %0, %1, %cst {dimension_numbers = #tpu.dot_dimension_numbers<[1], [0], [0], [1], [0, 0, 1, 1], [], []>} : vector<8x256xbf16>, vector<256x32xbf16>, vector<8x32xf32> -> vector<8x32xf32>
    %c0_3 = arith.constant 0 : index
    %c0_4 = arith.constant 0 : index
    %3 = vector.load %arg3[%c0_3, %c0_4] : memref<1x32xf32, #tpu.memory_space<vmem>>, vector<1x32xf32>
    %4 = vector.broadcast %3 : vector<1x32xf32> to vector<8x32xf32>
    %5 = arith.addf %2, %4 : vector<8x32xf32>
    %c0_5 = arith.constant 0 : index
    %c0_6 = arith.constant 0 : index
    %6 = vector.load %arg4[%c0_5, %c0_6] : memref<8x32xf32, #tpu.memory_space<vmem>>, vector<8x32xf32>
    tpu.vector_store %arg4[%c0_5, %c0_6], %5 {strides = array<i32>} : memref<8x32xf32, #tpu.memory_space<vmem>>, vector<8x32xf32>,
    return
  }
  func.func @transform_0(%arg0: i32) -> (i32, i32) {
    %c0_i32 = arith.constant 0 : i32
    %c0_i32_0 = arith.constant 0 : i32
    return %arg0, %c0_i32 : i32, i32
  }
  func.func @transform_1(%arg0: i32) -> (i32, i32) {
    %c0_i32 = arith.constant 0 : i32
    %c0_i32_0 = arith.constant 0 : i32
    %c0_i32_1 = arith.constant 0 : i32
    return %c0_i32, %c0_i32_0 : i32, i32
  }
  func.func @transform_2(%arg0: i32) -> (i32, i32) {
    %c0_i32 = arith.constant 0 : i32
    %c0_i32_0 = arith.constant 0 : i32
    %c0_i32_1 = arith.constant 0 : i32
    return %c0_i32, %c0_i32_0 : i32, i32
  }
  func.func @transform_3(%arg0: i32) -> (i32, i32) {
    %c0_i32 = arith.constant 0 : i32
    %c0_i32_0 = arith.constant 0 : i32
    return %arg0, %c0_i32 : i32, i32
  }
}

</mosaic_0001>

<llo_original>
// kernel: tpu_custom_call.1
$region0: #{tpu_custom_call.1}
  #allocation0 [shape = 'u32[]', space=smem, size = 0x4, offset = 0x4, fixed_abs, tag = 'smem constant byte address 0x4 - core index']
  #allocation1 [shape = 'u32[72,128]{1,0:T(1,128)}', space=vmem, size = 0x9000, scoped, tag = 'internal scratch']
  %s0 = inlined_call_operand.vmem [shape: bf16[8,256], index: 0, kind: input, shape index: {}]
  %s1 = inlined_call_operand.vmem [shape: bf16[256,32], index: 1, kind: input, shape index: {}]
  %s2 = inlined_call_operand.vmem [shape: f32[1,32], index: 2, kind: input, shape index: {}]
  %s3 = inlined_call_operand.hbm [shape: f32[8,32], index: 3, kind: output, shape index: {}]
  %s4 = sld [smem:[#allocation0]]
  $region22: #{tpu_custom_call.1} parent=0
    _
  %s6 = ssub.s32 1, %s4
  %s7 = scalar_select 0, %s6, %s4
  $region1: #{tpu_custom_call.1} parent=0
    #allocation2 [shape = 'u8[4096]{0}', space=vmem, size = 0x1000, scoped, tag = 'output window, operand 0, single buffered']
    #allocation3 [shape = 's32[1]{0}', space=sflag, size = 0x4, scoped, tag = 'scoped memory for tpu_custom_call.1']
    %8 = vsyncpa [#allocation3], 0
    // Predicated region
    $region2: #{tpu_custom_call.1} parent=1 // pred_check
      _
    $region3: #{tpu_custom_call.1} parent=1 // pred_check_branch
      %10 = sbr.rel (0) target = $region5
    $region4: #{tpu_custom_call.1} parent=1 // pred_region
      _
    $region5: #{tpu_custom_call.1} parent=1 // pred_fallthru
      _
    // Predicated region
    $region6: #{tpu_custom_call.1} parent=1 // pred_check
      _
    $region7: #{tpu_custom_call.1} parent=1 // pred_check_branch
      %12 = sbr.rel (0) target = $region9
    $region8: #{tpu_custom_call.1} parent=1 // pred_region
      _
    $region9: #{tpu_custom_call.1} parent=1 // pred_fallthru
      _
    // Predicated region
    $region10: #{tpu_custom_call.1} parent=1 // pred_check
      _
    $region11: #{tpu_custom_call.1} parent=1 // pred_check_branch
      %14 = sbr.rel (0) target = $region13
    $region12: #{tpu_custom_call.1} parent=1 // pred_region
      _
    $region13: #{tpu_custom_call.1} parent=1 // pred_fallthru
      _
    %v15 = vld [vmem:[%s0] sm:$0xff]
    %v16 = vld [vmem:[%s1] sm:$0xf]
    %v17 = vld [vmem:[%s1 + $0x4] sm:$0xf]
    %v18 = vld [vmem:[%s1 + $0x8] sm:$0xf]
    %v19 = vld [vmem:[%s1 + $0xc] sm:$0xf]
    %v20 = vld [vmem:[%s1 + $0x10] sm:$0xf]
    %v21 = vld [vmem:[%s1 + $0x14] sm:$0xf]
    %v22 = vld [vmem:[%s1 + $0x18] sm:$0xf]
    %v23 = vld [vmem:[%s1 + $0x1c] sm:$0xf]
    %v24 = vld [vmem:[%s1 + $0x20] sm:$0xf]
    %v25 = vld [vmem:[%s1 + $0x24] sm:$0xf]
    %v26 = vld [vmem:[%s1 + $0x28] sm:$0xf]
    %v27 = vld [vmem:[%s1 + $0x2c] sm:$0xf]
    %v28 = vld [vmem:[%s1 + $0x30] sm:$0xf]
    %v29 = vld [vmem:[%s1 + $0x34] sm:$0xf]
    %v30 = vld [vmem:[%s1 + $0x38] sm:$0xf]
    %v31 = vld [vmem:[%s1 + $0x3c] sm:$0xf]
    %v32 = vld [vmem:[%s1 + $0x40] sm:$0xf]
    %v33 = vld [vmem:[%s1 + $0x44] sm:$0xf]
    %v34 = vld [vmem:[%s1 + $0x48] sm:$0xf]
    %v35 = vld [vmem:[%s1 + $0x4c] sm:$0xf]
    %v36 = vld [vmem:[%s1 + $0x50] sm:$0xf]
    %v37 = vld [vmem:[%s1 + $0x54] sm:$0xf]
    %v38 = vld [vmem:[%s1 + $0x58] sm:$0xf]
    %v39 = vld [vmem:[%s1 + $0x5c] sm:$0xf]
    %v40 = vld [vmem:[%s1 + $0x60] sm:$0xf]
    %v41 = vld [vmem:[%s1 + $0x64] sm:$0xf]
    %v42 = vld [vmem:[%s1 + $0x68] sm:$0xf]
    %v43 = vld [vmem:[%s1 + $0x6c] sm:$0xf]
    %v44 = vld [vmem:[%s1 + $0x70] sm:$0xf]
    %v45 = vld [vmem:[%s1 + $0x74] sm:$0xf]
    %v46 = vld [vmem:[%s1 + $0x78] sm:$0xf]
    %v47 = vld [vmem:[%s1 + $0x7c] sm:$0xf]
    %v48 = vld [vmem:[%s2] sm:$0x1]
    %v50 = vperm.slane %v48, 0
    %v53 = vunpack.c.l.b16 %v15
    %v54 = vunpack.c.h.b16 %v15
    %v55 = vpack.c.b16 %v53, %v53
    %v56 = vpack.c.b16 %v54, %v54
    %v91 = vunpack.c.l.b16 %v16
    %v92 = vunpack.c.l.b16 %v17
    %v93 = vunpack.c.l.b16 %v18
    %v94 = vunpack.c.l.b16 %v19
    %v95 = vunpack.c.l.b16 %v20
    %v96 = vunpack.c.l.b16 %v21
    %v97 = vunpack.c.l.b16 %v22
    %v98 = vunpack.c.l.b16 %v23
    %v99 = vunpack.c.l.b16 %v24
    %v100 = vunpack.c.l.b16 %v25
    %v101 = vunpack.c.l.b16 %v26
    %v102 = vunpack.c.l.b16 %v27
    %v103 = vunpack.c.l.b16 %v28
    %v104 = vunpack.c.l.b16 %v29
    %v105 = vunpack.c.l.b16 %v30
    %v106 = vunpack.c.l.b16 %v31
    %v107 = vunpack.c.l.b16 %v32
    %v108 = vunpack.c.l.b16 %v33
    %v109 = vunpack.c.l.b16 %v34
    %v110 = vunpack.c.l.b16 %v35
    %v111 = vunpack.c.l.b16 %v36
    %v112 = vunpack.c.l.b16 %v37
    %v113 = vunpack.c.l.b16 %v38
    %v114 = vunpack.c.l.b16 %v39
    %v115 = vunpack.c.l.b16 %v40
    %v116 = vunpack.c.l.b16 %v41
    %v117 = vunpack.c.l.b16 %v42
    %v118 = vunpack.c.l.b16 %v43
    %v119 = vunpack.c.l.b16 %v44
    %v120 = vunpack.c.l.b16 %v45
    %v121 = vunpack.c.l.b16 %v46
    %v122 = vunpack.c.l.b16 %v47
    %v123 = vpack.c.b16 %v92, %v91
    %v124 = vpack.c.b16 %v94, %v93
    %v125 = vpack.c.b16 %v96, %v95
    %v126 = vpack.c.b16 %v98, %v97
    %v127 = vpack.c.b16 %v100, %v99
    %v128 = vpack.c.b16 %v102, %v101
    %v129 = vpack.c.b16 %v104, %v103
    %v130 = vpack.c.b16 %v106, %v105
    %v131 = vpack.c.b16 %v108, %v107
    %v132 = vpack.c.b16 %v110, %v109
    %v133 = vpack.c.b16 %v112, %v111
    %v134 = vpack.c.b16 %v114, %v113
    %v135 = vpack.c.b16 %v116, %v115
    %v136 = vpack.c.b16 %v118, %v117
    %v137 = vpack.c.b16 %v120, %v119
    %v138 = vpack.c.b16 %v122, %v121
    %155 = vmatpush.bf16.msra.mxu0 %v130
    %156 = vmatpush.bf16.msra.mxu0 %v129
    %157 = vmatpush.bf16.msra.mxu0 %v128
    %158 = vmatpush.bf16.msra.mxu0 %v127
    %159 = vmatpush.bf16.msra.mxu0 %v126
    %160 = vmatpush.bf16.msra.mxu0 %v125
    %161 = vmatpush.bf16.msra.mxu0 %v124
    %162 = vmatpush.bf16.msra.mxu0 %v123
    %163 = vmatmul.bf16.gmra.mxu0 %v55
    %v164 = vpop.f32.mrf.mxu0
    %v165 = vadd.f32 %v50, %v164
    %v166 = vpop.f32.mrf.mxu0
    %167 = vdwg.mxu0
    %168 = vmatpush.bf16.msra.mxu0 %v138
    %169 = vmatpush.bf16.msra.mxu0 %v137
    %170 = vmatpush.bf16.msra.mxu0 %v136
    %171 = vmatpush.bf16.msra.mxu0 %v135
    %172 = vmatpush.bf16.msra.mxu0 %v134
    %173 = vmatpush.bf16.msra.mxu0 %v133
    %174 = vmatpush.bf16.msra.mxu0 %v132
    %175 = vmatpush.bf16.msra.mxu0 %v131
    %176 = vmatmul.bf16.gmra.mxu0 %v56
    %v177 = vpop.f32.mrf.mxu0
    %v178 = vadd.f32 %v165, %v177
    %v179 = vpop.f32.mrf.mxu0
    %180 = vdwg.mxu0
    %vm181 = vcmask 261120
    %182 = vst.msk [vmem:[#allocation2] sm:$0xff] %vm181, %v178
    // Predicated region
    $region14: #{tpu_custom_call.1} parent=1 // pred_check
      _
    $region15: #{tpu_custom_call.1} parent=1 // pred_check_branch
      %184 = sbr.rel (0) target = $region17
    $region16: #{tpu_custom_call.1} parent=1 // pred_region
      %186 = vsyncadd [#allocation3], 0
      %s188 = sshll.u32 [#allocation2], 4
      %s189 = int_to_ptr.vmem [resolvable:$true] %s188
      %s190 = sshll.u32 %s3, 4
      %s191 = int_to_ptr.hbm [resolvable:$true] %s190
      %193 = dma.vmem_to_hbm [thread:$0]  %s189, 128, %s191, [#allocation3]
    $region17: #{tpu_custom_call.1} parent=1 // pred_fallthru
      _
    // Predicated region
    $region18: #{tpu_custom_call.1} parent=1 // pred_check
      _
    $region19: #{tpu_custom_call.1} parent=1 // pred_check_branch
      %195 = sbr.rel (0) target = $region21
    $region20: #{tpu_custom_call.1} parent=1 // pred_region
      %197 = dma.done [#allocation3], 128
    $region21: #{tpu_custom_call.1} parent=1 // pred_fallthru
      _
    %198 = vsyncpa [#allocation3], 1

</llo_original>
